<compile_context>
chip_gen: v5e
topology: v5e:2x2
jax: 0.10.0
libtpu: 0.0.40
codegen_flags: <defaults>
</compile_context>

<pallas_src>
import functools

import jax
import jax.numpy as jnp
from jax import lax
from jax.experimental import pallas as pl
from jax.experimental.pallas import tpu as pltpu


_CPAD = 16  # bf16 sublane tile: keeps in-kernel channel concatenation aligned


def _round_up(x, m):
    return (x + m - 1) // m * m


# ----------------------------------------------------------------------------
# pltpu.roll direction probe (resolved once; makes the tap gather robust to the
# roll sign convention).
# ----------------------------------------------------------------------------
_ROLL_JNP_LIKE = None


def _roll_probe_kernel(x_ref, o_ref):
    o_ref[...] = pltpu.roll(x_ref[...], shift=1, axis=1)


def _roll_is_jnp_like():
    """True if pltpu.roll follows jnp.roll semantics (result[i] = x[i - shift])."""
    global _ROLL_JNP_LIKE
    if _ROLL_JNP_LIKE is None:
        x = jnp.tile(jnp.arange(128, dtype=jnp.float32)[None, :], (8, 1))
        y = pl.pallas_call(
            _roll_probe_kernel,
            out_shape=jax.ShapeDtypeStruct((8, 128), jnp.float32),
        )(x)
        _ROLL_JNP_LIKE = bool(float(jax.device_get(y)[0, 0]) == 127.0)
    return _ROLL_JNP_LIKE


def _gather_shift(off, length):
    """pltpu.roll shift amount such that result[..., i] = x[..., i + off]."""
    if off == 0:
        return 0
    return (length - off) % length if _roll_is_jnp_like() else off % length


# ----------------------------------------------------------------------------
# Pallas kernel: single stacked-tap conv GEMM with fused prenorm / residual /
# InstanceNorm statistics
# ----------------------------------------------------------------------------
def _conv_stack_kernel(*refs, cfgs, n_add, add_shift, stride, depth, n_dout,
                       activation, emit_stats, inv_count):
    """One output depth plane per call: one stacked GEMM + fused epilogue."""
    it = iter(refs)
    plane_refs = [[next(it) for _ in range(c[0])] for c in cfgs]
    stat_refs = [((next(it), next(it)) if c[1] else None) for c in cfgs]
    add_refs = [next(it) for _ in range(n_add)]
    w_ref = next(it)          # (Cout, K) bf16, VMEM resident (constant index)
    b_ref = next(it)          # (Cout, 1) f32
    bm_ref = next(it)         # (1, L) in-plane border mask
    om_ref = next(it) if emit_stats else None   # (1, L) valid-output mask
    o_ref = next(it)
    if emit_stats:
        mean_ref = next(it)
        inv_ref = next(it)
        s_ref = next(it)      # scratch: running sum
        ss_ref = next(it)     # scratch: running sum of squares

    d = pl.program_id(1)

    # Build the stacked (K, L) bf16 operand: for each source, pre-process each
    # depth-tap plane once (fused InstanceNorm+ReLU, bf16 cast once), stack the
    # depth taps along sublanes, then roll the stack per in-plane tap.
    pieces = []
    for si, (n_planes, prenorm, dt_off, ip_shifts, _) in enumerate(cfgs):
        planes = []
        for a_i in range(n_planes):
            xp = plane_refs[si][a_i][0, 0]                    # (Cipad, L) bf16
            if prenorm:
                mean = stat_refs[si][0][0]                    # (Cipad, 1) f32
                inv = stat_refs[si][1][0]
                xf = (xp.astype(jnp.float32) - mean) * inv
                xf = jnp.maximum(xf, 0.0) * bm_ref[...]       # zero padded H/W border
                pidx = d * stride + dt_off[a_i]               # padded depth plane index
                gate = jnp.logical_and(pidx >= 1, pidx <= depth)
                xf = xf * gate.astype(jnp.float32)            # zero padded depth planes
                xp = xf.astype(jnp.bfloat16)                  # cast once, roll bf16
            planes.append(xp)
        zs = planes[0] if len(planes) == 1 else jnp.concatenate(planes, axis=0)
        for sh in ip_shifts:
            pieces.append(pltpu.roll(zs, shift=sh, axis=1) if sh else zs)
    stacked = pieces[0] if len(pieces) == 1 else jnp.concatenate(pieces, axis=0)

    out = jnp.dot(w_ref[...], stacked, preferred_element_type=jnp.float32)
    out = out + b_ref[...]
    for ar in add_refs:                                       # fused identity residual
        res = ar[0, 0]
        if add_shift:
            res = pltpu.roll(res, shift=add_shift, axis=1)
        out = out + res.astype(jnp.float32)
    if activation == "tanh":
        out = jnp.tanh(out)
    o_ref[0, 0] = out.astype(o_ref.dtype)

    if emit_stats:
        # Fused InstanceNorm statistics of this conv's (valid, strided) output.
        m = out * om_ref[...]
        s = jnp.sum(m, axis=1, keepdims=True)
        ss = jnp.sum(m * m, axis=1, keepdims=True)

        @pl.when(d == 0)
        def _():
            s_ref[...] = s
            ss_ref[...] = ss

        @pl.when(d != 0)
        def _():
            s_ref[...] += s
            ss_ref[...] += ss

        @pl.when(d == n_dout - 1)
        def _():
            mu = s_ref[...] * inv_count
            var = jnp.maximum(ss_ref[...] * inv_count - mu * mu, 0.0)
            mean_ref[0] = mu
            inv_ref[0] = lax.rsqrt(var + 1e-5)


def _pad_flat(x, cpad, L):
    """(B,D,C,H,W) -> zero-padded, plane-flattened (B, D+2, cpad, L) bf16."""
    B, D, C, H, W = x.shape
    Dp, Hp, Wp = D + 2, H + 2, W + 2
    xp = jnp.pad(x.astype(jnp.bfloat16),
                 ((0, 0), (1, 1), (0, cpad - C), (1, 1), (1, 1)))
    xp = xp.reshape(B, Dp, cpad, Hp * Wp)
    if L > Hp * Wp:
        xp = jnp.pad(xp, ((0, 0), (0, 0), (0, 0), (0, L - Hp * Wp)))
    return xp


def pallas_conv3d(sources, bias, *, stride=1, add_sources=(), activation=None,
                  out_dtype=jnp.bfloat16, emit_stats=True):
    """3-D 'same' conv (k=3 sources, optionally fused k=1 skip sources) as one
    stacked-tap GEMM per (batch, output-depth-plane) grid step.

    sources: list of (x, w, stats, k):
        x:     (B, D, Ci, H, W) canonical activation
        w:     (Cout, Ci, k, k, k) PyTorch Conv3d weight layout
        stats: None, or (mean, inv) each (B, Ci, 1) f32 -> InstanceNorm+ReLU of
               this source is fused into the conv (pre-activation).
        k:     3 (full conv) or 1 (fused 1x1x1 skip projection)
    Multiple sources emulate a channel-concatenated input without materializing
    the concat.  `add_sources` are (B, D, Cout, H, W) tensors added in the
    epilogue (fused identity residual).  Returns
    {"x": (B, Do, Cout, Ho, Wo), "stats": (mean, inv) | None}; the stats are the
    InstanceNorm statistics of the returned tensor (computed in-kernel from the
    f32 accumulator for the consumer's fused prenorm).
    """
    assert stride in (1, 2)
    B, D, _, H, W = sources[0][0].shape
    Cout = sources[0][1].shape[0]
    Dp, Hp, Wp = D + 2, H + 2, W + 2
    L = _round_up(Hp * Wp, 128)
    Do = (D - 1) // stride + 1
    Ho = -(-H // stride)
    Wo = -(-W // stride)
    centre_shift = _gather_shift(Wp + 1, L)

    inputs, in_specs = [], []
    stat_inputs, stat_specs = [], []
    w_pieces, cfgs = [], []

    for (x, w, stats, k) in sources:
        assert x.shape[0] == B and x.shape[1] == D and x.shape[3:] == (H, W)
        assert w.shape[0] == Cout
        Ci = x.shape[2]
        cpad = _round_up(Ci, _CPAD)
        xp = _pad_flat(x, cpad, L)
        if k == 3:
            dt_off = (0, 1, 2)
            ip = tuple((bb, cc) for bb in range(3) for cc in range(3))
        else:
            assert k == 1 and stride == 1
            dt_off = (1,)
            ip = ((1, 1),)     # centre tap in padded coordinates
        ip_shifts = tuple(_gather_shift(bb * Wp + cc, L) for bb, cc in ip)
        for a in dt_off:       # one lane-dense plane view per depth tap
            inputs.append(xp)
            in_specs.append(pl.BlockSpec(
                (1, 1, cpad, L),
                lambda b, d, a=a, s=stride: (b, d * s + a, 0, 0)))
        wf = w.astype(jnp.float32)
        for (bb, cc) in ip:    # weight columns in the kernel's stacking order
            for a in dt_off:
                piece = wf[:, :, a, bb, cc] if k == 3 else wf[:, :, 0, 0, 0]
                w_pieces.append(jnp.pad(piece, ((0, 0), (0, cpad - Ci))))
        prenorm = stats is not None
        if prenorm:
            pads = ((0, 0), (0, cpad - Ci), (0, 0))
            stat_inputs += [jnp.pad(stats[0], pads), jnp.pad(stats[1], pads)]
            stat_specs += [pl.BlockSpec((1, cpad, 1),
                                        lambda b, d: (b, 0, 0))] * 2
        cfgs.append((len(dt_off), prenorm, dt_off, ip_shifts, cpad))

    inputs += stat_inputs
    in_specs += stat_specs

    for r in add_sources:      # fused identity-residual adds
        assert r.shape == (B, D, Cout, H, W) and stride == 1
        inputs.append(_pad_flat(r, Cout, L))
        in_specs.append(pl.BlockSpec((1, 1, Cout, L),
                                     lambda b, d: (b, d + 1, 0, 0)))

    # Stacked weight / bias / masks: constant index_map -> VMEM resident.
    w_stack = jnp.concatenate(w_pieces, axis=1).astype(jnp.bfloat16)
    K = w_stack.shape[1]
    inputs.append(w_stack)
    in_specs.append(pl.BlockSpec((Cout, K), lambda b, d: (0, 0)))
    inputs.append(bias.reshape(Cout, 1).astype(jnp.float32))
    in_specs.append(pl.BlockSpec((Cout, 1), lambda b, d: (0, 0)))

    q = jnp.arange(L)
    hq, wq = q // Wp, q % Wp
    border = ((q < Hp * Wp) & (hq >= 1) & (hq <= H) & (wq >= 1) & (wq <= W))
    inputs.append(border.astype(jnp.float32).reshape(1, L))
    in_specs.append(pl.BlockSpec((1, L), lambda b, d: (0, 0)))
    if emit_stats:
        valid = ((hq < H) & (wq < W)
                 & (hq % stride == 0) & (wq % stride == 0))
        inputs.append(valid.astype(jnp.float32).reshape(1, L))
        in_specs.append(pl.BlockSpec((1, L), lambda b, d: (0, 0)))

    out_shapes = [jax.ShapeDtypeStruct((B, Do, Cout, L), out_dtype)]
    out_specs = [pl.BlockSpec((1, 1, Cout, L), lambda b, d: (b, d, 0, 0))]
    scratch = []
    if emit_stats:
        out_shapes += [jax.ShapeDtypeStruct((B, Cout, 1), jnp.float32)] * 2
        out_specs += [pl.BlockSpec((1, Cout, 1), lambda b, d: (b, 0, 0))] * 2
        scratch = [pltpu.VMEM((Cout, 1), jnp.float32),
                   pltpu.VMEM((Cout, 1), jnp.float32)]

    flops = 2 * B * Do * Cout * K * L
    trans = B * Do * Cout * L if activation == "tanh" else 0
    bytes_acc = int(sum(a.size * a.dtype.itemsize for a in inputs)
                    + B * Do * Cout * L * jnp.dtype(out_dtype).itemsize)

    kernel = functools.partial(
        _conv_stack_kernel, cfgs=tuple(cfgs), n_add=len(add_sources),
        add_shift=centre_shift, stride=stride, depth=D, n_dout=Do,
        activation=activation, emit_stats=emit_stats,
        inv_count=1.0 / float(Do * Ho * Wo))

    results = pl.pallas_call(
        kernel,
        out_shape=tuple(out_shapes),
        grid=(B, Do),
        in_specs=in_specs,
        out_specs=tuple(out_specs),
        scratch_shapes=scratch,
        compiler_params=pltpu.CompilerParams(
            # B is "parallel" (v7x megacore); the depth axis carries the fused
            # InstanceNorm-stats accumulation -> "arbitrary".
            dimension_semantics=("parallel", "arbitrary"),
            # Tiny blocks at these sizes; at production tile sizes re-derive
            # per generation (<= ~48 MiB on v7x, up to ~100 MiB on v5e/v6e).
            vmem_limit_bytes=32 * 1024 * 1024),
        cost_estimate=pl.CostEstimate(flops=flops, transcendentals=trans,
                                      bytes_accessed=bytes_acc),
    )(*inputs)

    raw = results[0]
    y = raw[..., :H * Wp].reshape(B, Do, Cout, H, Wp)[..., :W]
    if stride > 1:
        # TODO(synk): compute only the strided positions inside the kernel.
        y = y[:, :, :, ::stride, ::stride]
    stats_out = (results[1], results[2]) if emit_stats else None
    return {"x": y, "stats": stats_out}


# ----------------------------------------------------------------------------
# Blocks
# ----------------------------------------------------------------------------
def _split_w(w, cins):
    parts, off = [], 0
    for c in cins:
        parts.append(w[:, off:off + c])
        off += c
    return parts


def res_block(p, xs):
    """Pre-activation ResBlock over a (virtually channel-concatenated) input list.

    xs: list of {"x": tensor, "stats": (mean, inv)} activations.
    """
    cins = [t["x"].shape[2] for t in xs]
    w1 = _split_w(p["conv1"]["w"], cins)
    h = pallas_conv3d(
        [(xs[i]["x"], w1[i], xs[i]["stats"], 3) for i in range(len(xs))],
        p["conv1"]["b"])

    conv2_sources = [(h["x"], p["conv2"]["w"], h["stats"], 3)]
    add_sources = ()
    if "skip" in p:
        # 1x1x1 skip projection fused into conv2 as extra single-tap sources.
        ws = _split_w(p["skip"]["w"], cins)
        conv2_sources += [(xs[i]["x"], ws[i], None, 1) for i in range(len(xs))]
    else:
        assert len(xs) == 1
        add_sources = (xs[0]["x"],)   # identity residual fused into the epilogue
    return pallas_conv3d(conv2_sources, p["conv2"]["b"], add_sources=add_sources)


def upsample2(x):
    """Nearest-neighbour x2 upsample in D, H, W via a single broadcast."""
    # TODO(synk): fold into the following conv's index_map (src = dst // 2) so
    #             the 8x tensor never hits HBM.
    B, D, C, H, W = x.shape
    y = jnp.broadcast_to(x[:, :, None, :, :, None, :, None],
                         (B, D, 2, C, H, 2, W, 2))
    return y.reshape(B, 2 * D, C, 2 * H, 2 * W)


def generator_forward(params, x_ncdhw):
    # NCDHW -> canonical (B, D, C, H, W); activations travel as
    # {"x": bf16 tensor, "stats": fused InstanceNorm stats of that tensor}.
    x0 = jnp.transpose(x_ncdhw, (0, 2, 1, 3, 4)).astype(jnp.bfloat16)
    a = pallas_conv3d([(x0, params["in_proj"]["w"], None, 3)],
                      params["in_proj"]["b"])

    skips = []
    for blk in params["encoder"]:
        if "down" in blk:
            a = pallas_conv3d([(a["x"], blk["down"]["w"], None, 3)],
                              blk["down"]["b"], stride=2)
        a = res_block(blk["res"], [a])
        skips.append(a)

    for rp in params["middle"]:
        a = res_block(rp, [a])

    for blk in params["decoder"]:
        # Channel concat is folded into the ResBlock convs (two GEMM sources).
        a = res_block(blk["res"], [a, skips.pop()])
        if "up" in blk:
            xu = upsample2(a["x"])
            a = pallas_conv3d([(xu, blk["up"]["w"], None, 3)], blk["up"]["b"])

    out = pallas_conv3d([(a["x"], params["out_proj"]["w"], None, 3)],
                        params["out_proj"]["b"],
                        activation="tanh", out_dtype=jnp.float32,
                        emit_stats=False)
    return jnp.transpose(out["x"], (0, 2, 1, 3, 4))


# ----------------------------------------------------------------------------
# Parameters (deterministic, synthetic; PyTorch Conv3d weight layout)
# ----------------------------------------------------------------------------
class KeyGen:
    def __init__(self, key):
        self.key = key

    def __call__(self):
        self.key, sub = jax.random.split(self.key)
        return sub


def conv_params(kg, k, cin, cout):
    fan_in = k * k * k * cin
    w = jax.random.normal(kg(), (cout, cin, k, k, k), jnp.float32)
    w = w / jnp.sqrt(jnp.float32(fan_in))
    b = 0.01 * jax.random.normal(kg(), (cout,), jnp.float32)
    return {"w": w, "b": b}


def resblock_params(kg, cin, cout):
    p = {"conv1": conv_params(kg, 3, cin, cout),
         "conv2": conv_params(kg, 3, cout, cout)}
    if cin != cout:
        p["skip"] = conv_params(kg, 1, cin, cout)
    return p


def build_generator_params(kg, ngf, n_res_blocks, channel_multipliers):
    channels_list = [ngf * m for m in channel_multipliers]
    levels = len(channel_multipliers)
    params = {"in_proj": conv_params(kg, 3, 1, channels_list[0])}

    encoder_block_channels = []
    channels = channels_list[0]
    enc_blocks = []
    for i in range(levels):
        for j in range(n_res_blocks):
            blk = {}
            if i != 0 and j == 0:
                blk["down"] = conv_params(kg, 3, channels, channels)
            blk["res"] = resblock_params(kg, channels, channels_list[i])
            channels = channels_list[i]
            enc_blocks.append(blk)
            encoder_block_channels.append(channels)
    params["encoder"] = enc_blocks

    params["middle"] = [resblock_params(kg, channels, channels),
                        resblock_params(kg, channels, channels)]

    dec_blocks = []
    for i in reversed(range(levels)):
        for j in range(n_res_blocks):
            blk = {"res": resblock_params(
                kg, channels + encoder_block_channels.pop(), channels_list[i])}
            channels = channels_list[i]
            if i != 0 and j == n_res_blocks - 1:
                blk["up"] = conv_params(kg, 3, channels, channels)
            dec_blocks.append(blk)
    params["decoder"] = dec_blocks

    params["out_proj"] = conv_params(kg, 3, channels, 1)
    return params


# ----------------------------------------------------------------------------
# Pure-JAX (XLA) reference for a parity check
# ----------------------------------------------------------------------------
def ref_forward(params, x_ncdhw):
    dn = ("NCDHW", "OIDHW", "NCDHW")

    def conv(x, p, stride=1):
        y = lax.conv_general_dilated(x, p["w"], (stride,) * 3,
                                     [(1, 1)] * 3, dimension_numbers=dn)
        return y + p["b"].reshape(1, -1, 1, 1, 1)

    def conv1x1(x, p):
        y = lax.conv_general_dilated(x, p["w"], (1, 1, 1),
                                     [(0, 0)] * 3, dimension_numbers=dn)
        return y + p["b"].reshape(1, -1, 1, 1, 1)

    def inorm_relu(x):
        mean = jnp.mean(x, axis=(2, 3, 4), keepdims=True)
        var = jnp.mean((x - mean) ** 2, axis=(2, 3, 4), keepdims=True)
        return jnp.maximum((x - mean) * lax.rsqrt(var + 1e-5), 0.0)

    def resblk(p, x):
        h = conv(inorm_relu(x), p["conv1"])
        h = conv(inorm_relu(h), p["conv2"])
        s = conv1x1(x, p["skip"]) if "skip" in p else x
        return h + s

    def up(x):
        x = jnp.repeat(x, 2, axis=2)
        x = jnp.repeat(x, 2, axis=3)
        return jnp.repeat(x, 2, axis=4)

    x = x_ncdhw.astype(jnp.float32)
    x = conv(x, params["in_proj"])
    skips = []
    for blk in params["encoder"]:
        if "down" in blk:
            x = conv(x, blk["down"], stride=2)
        x = resblk(blk["res"], x)
        skips.append(x)
    for rp in params["middle"]:
        x = resblk(rp, x)
    for blk in params["decoder"]:
        x = jnp.concatenate([x, skips.pop()], axis=1)
        x = resblk(blk["res"], x)
        if "up" in blk:
            x = conv(up(x), blk["up"])
    return jnp.tanh(conv(x, params["out_proj"]))


# ----------------------------------------------------------------------------
# Main
# ----------------------------------------------------------------------------
if __name__ == "__main__":
    ngf = 4
    n_res_blocks = 1
    channel_multipliers = [1, 2]

    root = jax.random.PRNGKey(0)
    kg = KeyGen(jax.random.fold_in(root, 1))
    params = build_generator_params(kg, ngf, n_res_blocks, channel_multipliers)

    # Input: [batch, in_channels=1, depth, height, width]
    x = jax.random.normal(root, (2, 1, 8, 8, 8), jnp.float32)

    _roll_is_jnp_like()  # resolve pltpu.roll sign convention once

    fwd = jax.jit(generator_forward)
    out = jax.block_until_ready(fwd(params, x))

    assert out.shape == (2, 1, 8, 8, 8), out.shape
    assert bool(jnp.all(jnp.isfinite(out)))
    assert bool(jnp.all(jnp.abs(out) <= 1.0))  # tanh output range

    # Parity check vs. a pure-XLA f32 reference (Pallas path stores bf16
    # activations, hence the loose tolerance).
    ref = jax.block_until_ready(jax.jit(ref_forward)(params, x))
    max_err = float(jnp.max(jnp.abs(out - ref)))
    assert max_err < 0.25, f"mismatch vs reference: max_err={max_err}"

    print("KERNEL_OK")
</pallas_src>

<mosaic_0001>
module attributes {stable_mosaic.version = 11 : i64} {
  func.func @_roll_probe_kernel(%arg0: memref<8x128xf32, #tpu.memory_space<vmem>>, %arg1: memref<8x128xf32, #tpu.memory_space<vmem>>) attributes {dimension_semantics = [], scalar_prefetch = 0 : i64, scratch_operands = 0 : i64, tpu.core_type = #tpu.core_type<tc>} {
    %c0 = arith.constant 0 : index
    %c0_0 = arith.constant 0 : index
    %0 = vector.load %arg0[%c0, %c0_0] : memref<8x128xf32, #tpu.memory_space<vmem>>, vector<8x128xf32>
    %c1_i32 = arith.constant 1 : i32
    %1 = tpu.dynamic_rotate %0 by %c1_i32 dim 1 : vector<8x128xf32>, i32 -> vector<8x128xf32>
    %c0_1 = arith.constant 0 : index
    %c0_2 = arith.constant 0 : index
    %2 = vector.load %arg1[%c0_1, %c0_2] : memref<8x128xf32, #tpu.memory_space<vmem>>, vector<8x128xf32>
    tpu.vector_store %arg1[%c0_1, %c0_2], %1 {strides = array<i32>} : memref<8x128xf32, #tpu.memory_space<vmem>>, vector<8x128xf32>,
    return
  }
}

</mosaic_0001>

<llo_original>
// kernel: tpu_custom_call.1
$region0: #{tpu_custom_call.1}
  #allocation0 [shape = 'u32[]', space=smem, size = 0x4, offset = 0x4, fixed_abs, tag = 'smem constant byte address 0x4 - core index']
  #allocation1 [shape = 'u32[72,128]{1,0:T(1,128)}', space=vmem, size = 0x9000, scoped, tag = 'internal scratch']
  %s0 = inlined_call_operand.hbm [shape: f32[8,128], index: 0, kind: input, shape index: {}]
  %s1 = inlined_call_operand.hbm [shape: f32[8,128], index: 1, kind: output, shape index: {}]
  %s2 = sld [smem:[#allocation0]]
  $region18: #{tpu_custom_call.1} parent=0
    _
  %s4 = ssub.s32 1, %s2
  %s5 = scalar_select 0, %s4, %s2
  $region1: #{tpu_custom_call.1} parent=0
    #allocation2 [shape = 'u8[4096]{0}', space=vmem, size = 0x1000, scoped, tag = 'input window, operand 0, single buffered']
    #allocation3 [shape = 's32[1]{0}', space=sflag, size = 0x4, scoped, tag = 'scoped memory for tpu_custom_call.1']
    #allocation4 [shape = 's32[1]{0}', space=sflag, size = 0x4, scoped, tag = 'scoped memory for tpu_custom_call.1']
    #allocation5 [shape = 'u8[4096]{0}', space=vmem, size = 0x1000, scoped, tag = 'output window, operand 0, single buffered']
    %6 = vsyncpa [#allocation3], 0
    %7 = vsyncpa [#allocation4], 0
    // Predicated region
    $region2: #{tpu_custom_call.1} parent=1 // pred_check
      _
    $region3: #{tpu_custom_call.1} parent=1 // pred_check_branch
      %9 = sbr.rel (0) target = $region5
    $region4: #{tpu_custom_call.1} parent=1 // pred_region
      %11 = vsyncadd [#allocation3], 0
      %s13 = sshll.u32 %s0, 4
      %s14 = int_to_ptr.hbm [resolvable:$true] %s13
      %s15 = sshll.u32 [#allocation2], 4
      %s16 = int_to_ptr.vmem [resolvable:$true] %s15
      %18 = dma.hbm_to_vmem [thread:$0]  %s14, 128, %s16, [#allocation3]
    $region5: #{tpu_custom_call.1} parent=1 // pred_fallthru
      _
    // Predicated region
    $region6: #{tpu_custom_call.1} parent=1 // pred_check
      _
    $region7: #{tpu_custom_call.1} parent=1 // pred_check_branch
      %20 = sbr.rel (0) target = $region9
    $region8: #{tpu_custom_call.1} parent=1 // pred_region
      %22 = dma.done [#allocation3], 128
    $region9: #{tpu_custom_call.1} parent=1 // pred_fallthru
      _
    %v23 = vld [vmem:[#allocation2] sm:$0xff]
    %24 = vrot.lane.b32.xlu0 %v23, 1
    %v25 = vpop.permute.xlu0 %24
    %26 = vst [vmem:[#allocation5] sm:$0xff] %v25
    // Predicated region
    $region10: #{tpu_custom_call.1} parent=1 // pred_check
      _
    $region11: #{tpu_custom_call.1} parent=1 // pred_check_branch
      %28 = sbr.rel (0) target = $region13
    $region12: #{tpu_custom_call.1} parent=1 // pred_region
      %30 = vsyncadd [#allocation4], 0
      %s32 = sshll.u32 [#allocation5], 4
      %s33 = int_to_ptr.vmem [resolvable:$true] %s32
      %s34 = sshll.u32 %s1, 4
      %s35 = int_to_ptr.hbm [resolvable:$true] %s34
      %37 = dma.vmem_to_hbm [thread:$0]  %s33, 128, %s35, [#allocation4]
    $region13: #{tpu_custom_call.1} parent=1 // pred_fallthru
      _
    // Predicated region
    $region14: #{tpu_custom_call.1} parent=1 // pred_check
      _
    $region15: #{tpu_custom_call.1} parent=1 // pred_check_branch
      %39 = sbr.rel (0) target = $region17
    $region16: #{tpu_custom_call.1} parent=1 // pred_region
      %41 = dma.done [#allocation4], 128
    $region17: #{tpu_custom_call.1} parent=1 // pred_fallthru
      _
    %42 = vsyncpa [#allocation3], 1
    %43 = vsyncpa [#allocation4], 1

</llo_original>
